<compile_context>
chip_gen: v7x
topology: tpu7x:2x2x1
jax: 0.10.0
libtpu: 0.0.40
codegen_flags: <defaults>
</compile_context>

<pallas_src>
import functools
import math

import jax
import jax.numpy as jnp
from jax.experimental import pallas as pl
from jax.experimental.pallas import tpu as pltpu

SQRT_HALF = math.sqrt(0.5)


def cnn_encoder_kernel(e_ref, w_ref, b_ref, x_out_ref, xpad_ref, *,
                       k, pad, bt, L, C, emit_ncl, fuse_glu):
    """One grid step = one (batch-tile, conv-layer) pair.

    e_ref    : (bt, L, C) bf16 embedded-input tile (fetched once per batch tile)
    w_ref    : fuse_glu -> (1, k, C, 2C) bf16 per-layer conv weights (tap-major)
               else     -> (1, 2k, C, C) bf16; taps 0..k-1 = GLU 'a' half,
                           taps k..2k-1 = gate half
    b_ref    : fuse_glu -> (1, 1, 2C) f32 bias, else (1, 2, 1, C) f32
    x_out_ref: (bt, C, L) if emit_ncl else (bt, L, C), f32
    xpad_ref : (bt, L + 2*pad, C) f32 scratch carrying x across the layer axis
               (pad rows stay zero -> conv zero-padding for free).
    """
    li = pl.program_id(1)
    n_layers = pl.num_programs(1)

    # First layer of this batch tile: initialize the padded activation carry.
    @pl.when(li == 0)
    def _init():
        # Zero only the pad rows; the interior is fully overwritten below.
        if pad > 0:
            xpad_ref[:, :pad, :] = jnp.zeros((bt, pad, C), jnp.float32)
            xpad_ref[:, pad + L:, :] = jnp.zeros((bt, pad, C), jnp.float32)
        xpad_ref[:, pad:pad + L, :] = e_ref[...].astype(jnp.float32)

    # TODO(synk): F.dropout is identity at inference; training-mode dropout not implemented.

    # Per-tap matmul accumulation (no im2col concat: each shifted view is
    # consumed immediately, so no k-fold activation copy lives in VMEM).
    residual = None
    if fuse_glu:
        acc = jnp.broadcast_to(b_ref[0], (bt * L, 2 * C))
        for t in range(k):
            xt_f32 = xpad_ref[:, t:t + L, :].reshape(bt * L, C)
            if t == pad:
                residual = xt_f32                      # shift-0 tap == current x
            acc = acc + jnp.dot(xt_f32.astype(jnp.bfloat16), w_ref[0, t],
                                preferred_element_type=jnp.float32)
        a = acc[:, :C]                                 # lane-aligned (C % 128 == 0)
        g = acc[:, C:]
    else:
        a = jnp.broadcast_to(b_ref[0, 0], (bt * L, C))
        g = jnp.broadcast_to(b_ref[0, 1], (bt * L, C))
        for t in range(k):
            xt_f32 = xpad_ref[:, t:t + L, :].reshape(bt * L, C)
            if t == pad:
                residual = xt_f32
            xt = xt_f32.astype(jnp.bfloat16)
            a = a + jnp.dot(xt, w_ref[0, t], preferred_element_type=jnp.float32)
            g = g + jnp.dot(xt, w_ref[0, k + t], preferred_element_type=jnp.float32)

    # GLU + residual (f32), scaled by sqrt(0.5).
    x_new = (a * jax.nn.sigmoid(g) + residual) * SQRT_HALF

    # Not the last layer: carry x forward in the padded scratch.
    @pl.when(li < n_layers - 1)
    def _carry():
        xpad_ref[:, pad:pad + L, :] = x_new.reshape(bt, L, C)

    # Last layer: add the embedding skip connection and emit the output.
    # GradMultiply.forward is identity (it only scales gradients).
    @pl.when(li == n_layers - 1)
    def _final():
        e = e_ref[...].astype(jnp.float32).reshape(bt * L, C)
        xf = ((x_new + e) * SQRT_HALF).reshape(bt, L, C)
        if emit_ncl:
            # One batched minor-dim transpose -> dense 128-lane stores.
            x_out_ref[...] = jnp.swapaxes(xf, 1, 2).astype(x_out_ref.dtype)
        else:
            x_out_ref[...] = xf.astype(x_out_ref.dtype)


def _tile_vmem_bytes(bt, L, C, k, pad):
    """Rough per-step VMEM footprint: double-buffered blocks + body temporaries."""
    lp = L + 2 * pad
    blocks = (2 * bt * L * C * 2                    # e input block (bf16), dbl-buffered
              + 2 * (k * C * (2 * C) * 2 + 2 * C * 4)  # weight+bias blocks, dbl-buffered
              + 2 * bt * L * C * 4                  # output block (f32), dbl-buffered
              + bt * lp * C * 4)                    # activation carry scratch (f32)
    # body temps: f32 acc (2C wide) + x_new + residual + one bf16 tap + slack
    temps = bt * L * C * (2 * 4 + 4 + 4 + 2 + 4)
    return blocks + temps


def cnn_encoder_forward(token_ids, emb_table, conv_v, conv_g, conv_b, kernels,
                        *, batch_tile=None):
    """Runs the CNNEncoder forward.

    token_ids : (B, L) int32
    emb_table : (V, C) float32            (row 0 == padding_idx -> zeros)
    conv_v    : (n_layers, 2C, C, k)      weight_norm 'v' (PyTorch Conv1d layout)
    conv_g    : (n_layers, 1, 1, k)       weight_norm 'g' (dim=2)
    conv_b    : (n_layers, 2C)
    Returns (x, e), both (B, C, L) to match the PyTorch module.
    """
    n_layers = len(kernels)
    k = int(kernels[0])
    assert all(int(kk) == k for kk in kernels), "uniform kernel sizes expected"
    assert k % 2 == 1, "odd kernel size assumed (PyTorch padding=k//2 keeps length)"
    pad = k // 2

    # --- glue: embedding lookup + weight_norm materialization (plain JAX) ---
    e_f32 = emb_table[token_ids].astype(jnp.float32)            # (B, L, C)
    B, L, C = e_f32.shape
    # Kernel streams the embedding in bf16 (halves HBM read / VMEM block);
    # residual math stays f32 in-kernel.
    e_kern = e_f32.astype(jnp.bfloat16)

    # weight_norm(dim=2): w = g * v / ||v||, norm over (out_ch, in_ch) per tap
    # (the module explicitly uses dim=2).
    norm = jnp.sqrt(jnp.sum(conv_v * conv_v, axis=(1, 2), keepdims=True))
    w_eff = conv_g * conv_v / norm                              # (n_layers, 2C, C, k)
    wt = jnp.transpose(w_eff, (0, 3, 2, 1))                     # (n_layers, k, C_in, 2C_out)

    fuse_glu = (C % 128 == 0)        # lane-aligned a/g split of a fused accumulator
    if fuse_glu:
        w_kern = wt.astype(jnp.bfloat16)                        # (n_layers, k, C, 2C)
        b_kern = conv_b.reshape(n_layers, 1, 2 * C).astype(jnp.float32)
        w_spec = pl.BlockSpec((1, k, C, 2 * C), lambda b, l: (l, 0, 0, 0))
        b_spec = pl.BlockSpec((1, 1, 2 * C), lambda b, l: (l, 0, 0))
    else:
        # Keep the GLU halves on a leading axis: no lane-dim slicing needed.
        w_kern = jnp.concatenate([wt[..., :C], wt[..., C:]], axis=1)   # (n_layers, 2k, C, C)
        w_kern = w_kern.astype(jnp.bfloat16)
        b_kern = jnp.stack([conv_b[:, :C], conv_b[:, C:]], axis=1)     # (n_layers, 2, C)
        b_kern = b_kern.reshape(n_layers, 2, 1, C).astype(jnp.float32)
        w_spec = pl.BlockSpec((1, 2 * k, C, C), lambda b, l: (l, 0, 0, 0))
        b_spec = pl.BlockSpec((1, 2, 1, C), lambda b, l: (l, 0, 0, 0))

    # --- batch-tile selection: large tiles (bt*L ~ 1-2K rows) amortize the
    # per-(tile, layer) weight DMA and grid-step overhead, within a
    # generation-aware VMEM budget that includes body temporaries. ---
    try:
        vmem_cap = int(pltpu.get_tpu_info().vmem_capacity_bytes)
    except Exception:
        vmem_cap = 64 << 20                     # conservative (v7x per-core VMEM)
    budget = int(0.70 * vmem_cap)               # leave compiler / pipeline headroom

    if batch_tile is None:
        divs = [d for d in range(1, B + 1) if B % d == 0]
        target = max(1, 2048 // max(L, 1))      # cap the matmul M dim at ~2K rows
        fits = [d for d in divs
                if d <= target and _tile_vmem_bytes(d, L, C, k, pad) <= budget]
        if not fits:
            fits = [1]
        bt = max(fits)
        # Prefer >= 2 batch tiles so the "parallel" axis can occupy both v7x
        # TensorCores, unless that shrinks the matmul M dim too far.
        two_core = [d for d in fits if B // d >= 2]
        if two_core and max(two_core) * L >= min(512, bt * L):
            bt = max(two_core)
    else:
        bt = int(batch_tile)
        assert B % bt == 0
    nb = B // bt
    lp = L + 2 * pad

    # Emit (B, C, L) from the kernel only when the transposed store stays
    # lane/sublane dense; otherwise use the cheap wrapper transpose.
    emit_ncl = (L % 128 == 0) and (C % 8 == 0)
    out_block = (bt, C, L) if emit_ncl else (bt, L, C)
    out_shape = (B, C, L) if emit_ncl else (B, L, C)

    need = _tile_vmem_bytes(bt, L, C, k, pad)
    vmem_limit = int(min(int(0.85 * vmem_cap), max(32 << 20, need + (8 << 20))))

    kern = functools.partial(cnn_encoder_kernel, k=k, pad=pad, bt=bt, L=L, C=C,
                             emit_ncl=emit_ncl, fuse_glu=fuse_glu)
    x_out = pl.pallas_call(
        kern,
        out_shape=jax.ShapeDtypeStruct(out_shape, jnp.float32),
        grid_spec=pltpu.PrefetchScalarGridSpec(
            num_scalar_prefetch=0,
            grid=(nb, n_layers),                      # layer axis innermost (carried)
            in_specs=[
                pl.BlockSpec((bt, L, C), lambda b, l: (b, 0, 0)),
                w_spec,
                b_spec,
            ],
            out_specs=pl.BlockSpec(out_block, lambda b, l: (b, 0, 0)),
            scratch_shapes=[pltpu.VMEM((bt, lp, C), jnp.float32)],
        ),
        compiler_params=pltpu.CompilerParams(
            dimension_semantics=("parallel", "arbitrary"),
            vmem_limit_bytes=vmem_limit),
    )(e_kern, w_kern, b_kern)

    if not emit_ncl:
        x_out = jnp.transpose(x_out, (0, 2, 1))                 # -> (B, C, L)
    # `e` is just the embedded input: return the exact f32 embedding from the
    # wrapper instead of writing an identical copy back out of the kernel.
    e_bcl = jnp.transpose(e_f32, (0, 2, 1))                     # -> (B, C, L)
    return x_out, e_bcl


def _reference_forward(token_ids, emb_table, conv_v, conv_g, conv_b, kernels):
    """Plain-JAX f32 reference of the same forward (correctness check)."""
    e = emb_table[token_ids]                                    # (B, L, C)
    norm = jnp.sqrt(jnp.sum(conv_v * conv_v, axis=(1, 2), keepdims=True))
    w_eff = conv_g * conv_v / norm
    x = e
    B, L, C = e.shape
    for li, k in enumerate(kernels):
        residual = x
        pad = k // 2
        xp = jnp.pad(x, ((0, 0), (pad, pad), (0, 0)))
        acc = jnp.broadcast_to(conv_b[li], (B, L, 2 * C))
        for t in range(k):
            acc = acc + jnp.einsum('blc,dc->bld', xp[:, t:t + L, :], w_eff[li, :, :, t])
        a, g = acc[..., :C], acc[..., C:]
        x = (a * jax.nn.sigmoid(g) + residual) * SQRT_HALF
    x = (x + e) * SQRT_HALF
    return jnp.transpose(x, (0, 2, 1)), jnp.transpose(e, (0, 2, 1))


def _run_case(name, batch, seq_len, emb_size, vocab_size, kernels, dropout, seed):
    key = jax.random.PRNGKey(seed)
    k_emb, k_tok, *k_convs = jax.random.split(key, 2 + len(kernels))

    # Embedding: normal(0, 0.1), padding_idx=0 row zeroed.
    emb_table = 0.1 * jax.random.normal(k_emb, (vocab_size, emb_size), jnp.float32)
    emb_table = emb_table.at[0].set(0.0)
    token_ids = jax.random.randint(k_tok, (batch, seq_len), 0, vocab_size, jnp.int32)

    # Conv params: v ~ normal(0, std), g initialized to ||v|| (weight_norm init),
    # bias zero.  Effective weight at init therefore equals v.
    n_layers = len(kernels)
    kk = kernels[0]
    input_dim = emb_size
    std = math.sqrt(4.0 * (1.0 - dropout) / (kk * input_dim))
    conv_v = jnp.stack([
        std * jax.random.normal(k_convs[i], (2 * input_dim, input_dim, kk), jnp.float32)
        for i in range(n_layers)
    ])                                                          # (n_layers, 2C, C, k)
    conv_g = jnp.sqrt(jnp.sum(conv_v * conv_v, axis=(1, 2), keepdims=True))
    conv_b = jnp.zeros((n_layers, 2 * input_dim), jnp.float32)

    x_out, e_out = cnn_encoder_forward(token_ids, emb_table, conv_v, conv_g,
                                       conv_b, kernels)
    jax.block_until_ready((x_out, e_out))

    x_ref, e_ref = _reference_forward(token_ids, emb_table, conv_v, conv_g,
                                      conv_b, kernels)
    assert x_out.shape == (batch, emb_size, seq_len), name
    assert e_out.shape == (batch, emb_size, seq_len), name
    # bf16 MXU operands / bf16-streamed embedding vs f32 reference.
    assert jnp.allclose(x_out, x_ref, atol=2e-2, rtol=2e-2), name
    assert jnp.allclose(e_out, e_ref, atol=1e-5, rtol=1e-5), name


if __name__ == "__main__":
    # decoder_attn_layers only affects gradients (GradMultiply) -> unused in fwd.
    # Case 1: small shapes (C < 128) -> split-GLU weights, (B, L, C) kernel
    #         output + wrapper transpose (word_level=True branch of the module).
    _run_case("small", batch=2, seq_len=16, emb_size=32, vocab_size=50,
              kernels=(3, 3), dropout=0.1, seed=0)
    # Case 2: TPU-native shapes (C, L multiples of 128) -> fused-GLU single
    #         matmul per tap + in-kernel transposed (B, C, L) emit.
    _run_case("native", batch=2, seq_len=128, emb_size=128, vocab_size=50,
              kernels=(3, 3), dropout=0.1, seed=0)
    print("KERNEL_OK")
</pallas_src>

<mosaic_0001>
module attributes {stable_mosaic.version = 11 : i64} {
  func.func @cnn_encoder_kernel(%arg0: i32, %arg1: i32, %arg2: memref<2x16x32xbf16, #tpu.memory_space<vmem>>, %arg3: memref<1x6x32x32xbf16, #tpu.memory_space<vmem>>, %arg4: memref<1x2x1x32xf32, #tpu.memory_space<vmem>>, %arg5: memref<2x16x32xf32, #tpu.memory_space<vmem>>, %arg6: memref<2x18x32xf32, #tpu.memory_space<vmem>>) attributes {dimension_semantics = [#tpu.dimension_semantics<parallel>, #tpu.dimension_semantics<arbitrary>], iteration_bounds = array<i64: 1, 2>, scalar_prefetch = 0 : i64, scratch_operands = 1 : i64, tpu.core_type = #tpu.core_type<tc>, window_params = [{transform_indices = @transform_0, window_bounds = array<i64: 2, 16, 32>}, {transform_indices = @transform_1, window_bounds = array<i64: 1, 6, 32, 32>}, {transform_indices = @transform_2, window_bounds = array<i64: 1, 2, 1, 32>}, {transform_indices = @transform_3, window_bounds = array<i64: 2, 16, 32>}]} {
    %c0_i32 = arith.constant 0 : i32
    %0 = arith.cmpi eq, %arg1, %c0_i32 : i32
    %1 = arith.extui %0 : i1 to i32
    %c0_i32_0 = arith.constant 0 : i32
    %2 = arith.cmpi ne, %1, %c0_i32_0 : i32
    scf.if %2 {
      %cst_46 = arith.constant 0.000000e+00 : f32
      %59 = vector.broadcast %cst_46 : f32 to vector<2x1x32xf32>
      %c0_47 = arith.constant 0 : index
      %c0_48 = arith.constant 0 : index
      %c0_49 = arith.constant 0 : index
      %60 = vector.load %arg6[%c0_47, %c0_48, %c0_49] : memref<2x18x32xf32, #tpu.memory_space<vmem>>, vector<2x1x32xf32>
      tpu.vector_store %arg6[%c0_47, %c0_48, %c0_49], %59 {strides = array<i32>} : memref<2x18x32xf32, #tpu.memory_space<vmem>>, vector<2x1x32xf32>,
      %cst_50 = arith.constant 0.000000e+00 : f32
      %61 = vector.broadcast %cst_50 : f32 to vector<2x1x32xf32>
      %c0_51 = arith.constant 0 : index
      %c17 = arith.constant 17 : index
      %c0_52 = arith.constant 0 : index
      %62 = vector.load %arg6[%c0_51, %c17, %c0_52] : memref<2x18x32xf32, #tpu.memory_space<vmem>>, vector<2x1x32xf32>
      tpu.vector_store %arg6[%c0_51, %c17, %c0_52], %61 {strides = array<i32>} : memref<2x18x32xf32, #tpu.memory_space<vmem>>, vector<2x1x32xf32>,
      %c0_53 = arith.constant 0 : index
      %c0_54 = arith.constant 0 : index
      %c0_55 = arith.constant 0 : index
      %63 = vector.load %arg2[%c0_53, %c0_54, %c0_55] : memref<2x16x32xbf16, #tpu.memory_space<vmem>>, vector<2x16x32xbf16>
      %64 = arith.extf %63 : vector<2x16x32xbf16> to vector<2x16x32xf32>
      %c0_56 = arith.constant 0 : index
      %c1_57 = arith.constant 1 : index
      %c0_58 = arith.constant 0 : index
      %65 = vector.load %arg6[%c0_56, %c1_57, %c0_58] : memref<2x18x32xf32, #tpu.memory_space<vmem>>, vector<2x16x32xf32>
      tpu.vector_store %arg6[%c0_56, %c1_57, %c0_58], %64 {strides = array<i32>} : memref<2x18x32xf32, #tpu.memory_space<vmem>>, vector<2x16x32xf32>,
    } else {
    }
    %c0 = arith.constant 0 : index
    %c0_1 = arith.constant 0 : index
    %c0_2 = arith.constant 0 : index
    %c0_3 = arith.constant 0 : index
    %3 = vector.load %arg4[%c0, %c0_1, %c0_2, %c0_3] : memref<1x2x1x32xf32, #tpu.memory_space<vmem>>, vector<1x1x1x32xf32>
    %4 = vector.shape_cast %3 : vector<1x1x1x32xf32> to vector<1x32xf32>
    %5 = vector.shape_cast %4 : vector<1x32xf32> to vector<1x32xf32>
    %6 = vector.broadcast %5 : vector<1x32xf32> to vector<32x32xf32>
    %c0_4 = arith.constant 0 : index
    %c1 = arith.constant 1 : index
    %c0_5 = arith.constant 0 : index
    %c0_6 = arith.constant 0 : index
    %7 = vector.load %arg4[%c0_4, %c1, %c0_5, %c0_6] : memref<1x2x1x32xf32, #tpu.memory_space<vmem>>, vector<1x1x1x32xf32>
    %8 = vector.shape_cast %7 : vector<1x1x1x32xf32> to vector<1x32xf32>
    %9 = vector.shape_cast %8 : vector<1x32xf32> to vector<1x32xf32>
    %10 = vector.broadcast %9 : vector<1x32xf32> to vector<32x32xf32>
    %c0_7 = arith.constant 0 : index
    %c0_8 = arith.constant 0 : index
    %c0_9 = arith.constant 0 : index
    %11 = vector.load %arg6[%c0_7, %c0_8, %c0_9] : memref<2x18x32xf32, #tpu.memory_space<vmem>>, vector<2x16x32xf32>
    %12 = vector.shape_cast %11 : vector<2x16x32xf32> to vector<32x32xf32>
    %13 = arith.truncf %12 : vector<32x32xf32> to vector<32x32xbf16>
    %c0_10 = arith.constant 0 : index
    %c0_11 = arith.constant 0 : index
    %c0_12 = arith.constant 0 : index
    %c0_13 = arith.constant 0 : index
    %14 = vector.load %arg3[%c0_10, %c0_11, %c0_12, %c0_13] : memref<1x6x32x32xbf16, #tpu.memory_space<vmem>>, vector<1x1x32x32xbf16>
    %15 = vector.shape_cast %14 : vector<1x1x32x32xbf16> to vector<32x32xbf16>
    %cst = arith.constant dense<0.000000e+00> : vector<32x32xf32>
    %16 = tpu.matmul %13, %15, %cst {dimension_numbers = #tpu.dot_dimension_numbers<[1], [0], [0], [1], [0, 0, 1, 1], [], []>} : vector<32x32xbf16>, vector<32x32xbf16>, vector<32x32xf32> -> vector<32x32xf32>
    %17 = arith.addf %6, %16 : vector<32x32xf32>
    %c0_14 = arith.constant 0 : index
    %c3 = arith.constant 3 : index
    %c0_15 = arith.constant 0 : index
    %c0_16 = arith.constant 0 : index
    %18 = vector.load %arg3[%c0_14, %c3, %c0_15, %c0_16] : memref<1x6x32x32xbf16, #tpu.memory_space<vmem>>, vector<1x1x32x32xbf16>
    %19 = vector.shape_cast %18 : vector<1x1x32x32xbf16> to vector<32x32xbf16>
    %cst_17 = arith.constant dense<0.000000e+00> : vector<32x32xf32>
    %20 = tpu.matmul %13, %19, %cst_17 {dimension_numbers = #tpu.dot_dimension_numbers<[1], [0], [0], [1], [0, 0, 1, 1], [], []>} : vector<32x32xbf16>, vector<32x32xbf16>, vector<32x32xf32> -> vector<32x32xf32>
    %21 = arith.addf %10, %20 : vector<32x32xf32>
    %c0_18 = arith.constant 0 : index
    %c1_19 = arith.constant 1 : index
    %c0_20 = arith.constant 0 : index
    %22 = vector.load %arg6[%c0_18, %c1_19, %c0_20] : memref<2x18x32xf32, #tpu.memory_space<vmem>>, vector<2x16x32xf32>
    %23 = vector.shape_cast %22 : vector<2x16x32xf32> to vector<32x32xf32>
    %24 = arith.truncf %23 : vector<32x32xf32> to vector<32x32xbf16>
    %c0_21 = arith.constant 0 : index
    %c1_22 = arith.constant 1 : index
    %c0_23 = arith.constant 0 : index
    %c0_24 = arith.constant 0 : index
    %25 = vector.load %arg3[%c0_21, %c1_22, %c0_23, %c0_24] : memref<1x6x32x32xbf16, #tpu.memory_space<vmem>>, vector<1x1x32x32xbf16>
    %26 = vector.shape_cast %25 : vector<1x1x32x32xbf16> to vector<32x32xbf16>
    %cst_25 = arith.constant dense<0.000000e+00> : vector<32x32xf32>
    %27 = tpu.matmul %24, %26, %cst_25 {dimension_numbers = #tpu.dot_dimension_numbers<[1], [0], [0], [1], [0, 0, 1, 1], [], []>} : vector<32x32xbf16>, vector<32x32xbf16>, vector<32x32xf32> -> vector<32x32xf32>
    %28 = arith.addf %17, %27 : vector<32x32xf32>
    %c0_26 = arith.constant 0 : index
    %c4 = arith.constant 4 : index
    %c0_27 = arith.constant 0 : index
    %c0_28 = arith.constant 0 : index
    %29 = vector.load %arg3[%c0_26, %c4, %c0_27, %c0_28] : memref<1x6x32x32xbf16, #tpu.memory_space<vmem>>, vector<1x1x32x32xbf16>
    %30 = vector.shape_cast %29 : vector<1x1x32x32xbf16> to vector<32x32xbf16>
    %cst_29 = arith.constant dense<0.000000e+00> : vector<32x32xf32>
    %31 = tpu.matmul %24, %30, %cst_29 {dimension_numbers = #tpu.dot_dimension_numbers<[1], [0], [0], [1], [0, 0, 1, 1], [], []>} : vector<32x32xbf16>, vector<32x32xbf16>, vector<32x32xf32> -> vector<32x32xf32>
    %32 = arith.addf %21, %31 : vector<32x32xf32>
    %c0_30 = arith.constant 0 : index
    %c2 = arith.constant 2 : index
    %c0_31 = arith.constant 0 : index
    %33 = vector.load %arg6[%c0_30, %c2, %c0_31] : memref<2x18x32xf32, #tpu.memory_space<vmem>>, vector<2x16x32xf32>
    %34 = vector.shape_cast %33 : vector<2x16x32xf32> to vector<32x32xf32>
    %35 = arith.truncf %34 : vector<32x32xf32> to vector<32x32xbf16>
    %c0_32 = arith.constant 0 : index
    %c2_33 = arith.constant 2 : index
    %c0_34 = arith.constant 0 : index
    %c0_35 = arith.constant 0 : index
    %36 = vector.load %arg3[%c0_32, %c2_33, %c0_34, %c0_35] : memref<1x6x32x32xbf16, #tpu.memory_space<vmem>>, vector<1x1x32x32xbf16>
    %37 = vector.shape_cast %36 : vector<1x1x32x32xbf16> to vector<32x32xbf16>
    %cst_36 = arith.constant dense<0.000000e+00> : vector<32x32xf32>
    %38 = tpu.matmul %35, %37, %cst_36 {dimension_numbers = #tpu.dot_dimension_numbers<[1], [0], [0], [1], [0, 0, 1, 1], [], []>} : vector<32x32xbf16>, vector<32x32xbf16>, vector<32x32xf32> -> vector<32x32xf32>
    %39 = arith.addf %28, %38 : vector<32x32xf32>
    %c0_37 = arith.constant 0 : index
    %c5 = arith.constant 5 : index
    %c0_38 = arith.constant 0 : index
    %c0_39 = arith.constant 0 : index
    %40 = vector.load %arg3[%c0_37, %c5, %c0_38, %c0_39] : memref<1x6x32x32xbf16, #tpu.memory_space<vmem>>, vector<1x1x32x32xbf16>
    %41 = vector.shape_cast %40 : vector<1x1x32x32xbf16> to vector<32x32xbf16>
    %cst_40 = arith.constant dense<0.000000e+00> : vector<32x32xf32>
    %42 = tpu.matmul %35, %41, %cst_40 {dimension_numbers = #tpu.dot_dimension_numbers<[1], [0], [0], [1], [0, 0, 1, 1], [], []>} : vector<32x32xbf16>, vector<32x32xbf16>, vector<32x32xf32> -> vector<32x32xf32>
    %43 = arith.addf %32, %42 : vector<32x32xf32>
    %44 = arith.negf %43 : vector<32x32xf32>
    %45 = math.exp %44 : vector<32x32xf32>
    %cst_41 = arith.constant 1.000000e+00 : f32
    %46 = vector.broadcast %cst_41 : f32 to vector<32x32xf32>
    %47 = arith.addf %46, %45 : vector<32x32xf32>
    %48 = arith.divf %46, %47 : vector<32x32xf32>
    %49 = arith.mulf %39, %48 : vector<32x32xf32>
    %50 = arith.addf %49, %23 : vector<32x32xf32>
    %cst_42 = arith.constant 0.707106769 : f32
    %51 = vector.broadcast %cst_42 : f32 to vector<32x32xf32>
    %52 = arith.mulf %50, %51 : vector<32x32xf32>
    %c1_i32 = arith.constant 1 : i32
    %53 = arith.cmpi slt, %arg1, %c1_i32 : i32
    %54 = arith.extui %53 : i1 to i32
    %c0_i32_43 = arith.constant 0 : i32
    %55 = arith.cmpi ne, %54, %c0_i32_43 : i32
    scf.if %55 {
      %59 = vector.shape_cast %52 : vector<32x32xf32> to vector<2x16x32xf32>
      %c0_46 = arith.constant 0 : index
      %c1_47 = arith.constant 1 : index
      %c0_48 = arith.constant 0 : index
      %60 = vector.load %arg6[%c0_46, %c1_47, %c0_48] : memref<2x18x32xf32, #tpu.memory_space<vmem>>, vector<2x16x32xf32>
      tpu.vector_store %arg6[%c0_46, %c1_47, %c0_48], %59 {strides = array<i32>} : memref<2x18x32xf32, #tpu.memory_space<vmem>>, vector<2x16x32xf32>,
    } else {
    }
    %c1_i32_44 = arith.constant 1 : i32
    %56 = arith.cmpi eq, %arg1, %c1_i32_44 : i32
    %57 = arith.extui %56 : i1 to i32
    %c0_i32_45 = arith.constant 0 : i32
    %58 = arith.cmpi ne, %57, %c0_i32_45 : i32
    scf.if %58 {
      %c0_46 = arith.constant 0 : index
      %c0_47 = arith.constant 0 : index
      %c0_48 = arith.constant 0 : index
      %59 = vector.load %arg2[%c0_46, %c0_47, %c0_48] : memref<2x16x32xbf16, #tpu.memory_space<vmem>>, vector<2x16x32xbf16>
      %60 = arith.extf %59 : vector<2x16x32xbf16> to vector<2x16x32xf32>
      %61 = vector.shape_cast %60 : vector<2x16x32xf32> to vector<32x32xf32>
      %62 = arith.addf %52, %61 : vector<32x32xf32>
      %cst_49 = arith.constant 0.707106769 : f32
      %63 = vector.broadcast %cst_49 : f32 to vector<32x32xf32>
      %64 = arith.mulf %62, %63 : vector<32x32xf32>
      %65 = vector.shape_cast %64 : vector<32x32xf32> to vector<2x16x32xf32>
      %c0_50 = arith.constant 0 : index
      %c0_51 = arith.constant 0 : index
      %c0_52 = arith.constant 0 : index
      %66 = vector.load %arg5[%c0_50, %c0_51, %c0_52] : memref<2x16x32xf32, #tpu.memory_space<vmem>>, vector<2x16x32xf32>
      tpu.vector_store %arg5[%c0_50, %c0_51, %c0_52], %65 {strides = array<i32>} : memref<2x16x32xf32, #tpu.memory_space<vmem>>, vector<2x16x32xf32>,
    } else {
    }
    return
  }
  func.func @transform_0(%arg0: i32, %arg1: i32) -> (i32, i32, i32) {
    %c0_i32 = arith.constant 0 : i32
    %c0_i32_0 = arith.constant 0 : i32
    %c0_i32_1 = arith.constant 0 : i32
    return %arg0, %c0_i32, %c0_i32_0 : i32, i32, i32
  }
  func.func @transform_1(%arg0: i32, %arg1: i32) -> (i32, i32, i32, i32) {
    %c0_i32 = arith.constant 0 : i32
    %c0_i32_0 = arith.constant 0 : i32
    %c0_i32_1 = arith.constant 0 : i32
    %c0_i32_2 = arith.constant 0 : i32
    return %arg1, %c0_i32, %c0_i32_0, %c0_i32_1 : i32, i32, i32, i32
  }
  func.func @transform_2(%arg0: i32, %arg1: i32) -> (i32, i32, i32, i32) {
    %c0_i32 = arith.constant 0 : i32
    %c0_i32_0 = arith.constant 0 : i32
    %c0_i32_1 = arith.constant 0 : i32
    %c0_i32_2 = arith.constant 0 : i32
    return %arg1, %c0_i32, %c0_i32_0, %c0_i32_1 : i32, i32, i32, i32
  }
  func.func @transform_3(%arg0: i32, %arg1: i32) -> (i32, i32, i32) {
    %c0_i32 = arith.constant 0 : i32
    %c0_i32_0 = arith.constant 0 : i32
    %c0_i32_1 = arith.constant 0 : i32
    return %arg0, %c0_i32, %c0_i32_0 : i32, i32, i32
  }
}

</mosaic_0001>

<llo_original>
// kernel: tpu_custom_call.1
$region0: #{tpu_custom_call.1}
  #allocation0 [shape = 'u32[]', space=smem, size = 0x4, offset = 0x4, fixed_abs, tag = 'smem constant byte address 0x4 - core index']
  #allocation1 [shape = 'u32[144,128]{1,0:T(1,128)}', space=vmem, size = 0x12000, scoped, tag = 'internal scratch']
  #allocation2 [shape = 'f32[2,18,32]{2,1,0:T(8,128)}', space=vmem, size = 0x6000, scoped, tag = 'scratch operand']
  %s0 = inlined_call_operand.hbm [shape: bf16[2,16,32], index: 0, kind: input, shape index: {}]
  %s1 = inlined_call_operand.hbm [shape: bf16[2,6,32,32], index: 1, kind: input, shape index: {}]
  %s2 = inlined_call_operand.vmem [shape: f32[2,2,1,32], index: 2, kind: input, shape index: {}]
  %s3 = inlined_call_operand.hbm [shape: f32[2,16,32], index: 3, kind: output, shape index: {}]
  %s4 = sld [smem:[#allocation0]]
  $region65: #{tpu_custom_call.1} parent=0
    _
  %s6 = ssub.s32 1, %s4
  %s7 = scalar_select 0, %s6, %s4
  $region1: #{tpu_custom_call.1} parent=0
    #allocation3 [shape = 'u8[8192]{0}', space=vmem, size = 0x2000, scoped, tag = 'input window, operand 0, single buffered']
    #allocation4 [shape = 's32[2]{0}', space=sflag, size = 0x8, scoped, tag = 'scoped memory for tpu_custom_call.1']
    #allocation5 [shape = 's32[2]{0}', space=sflag, size = 0x8, scoped, tag = 'scoped memory for tpu_custom_call.1']
    #allocation6 [shape = 'u8[98304]{0}', space=vmem, size = 0x18000, scoped, tag = 'input window, operand 1']
    #allocation7 [shape = 's32[2]{0}', space=sflag, size = 0x8, scoped, tag = 'scoped memory for tpu_custom_call.1']
    #allocation8 [shape = 'u8[16384]{0}', space=vmem, size = 0x4000, scoped, tag = 'output window, operand 0, single buffered']
    %8 = vsyncpa [#allocation4], 0
    %9 = vsyncpa [#allocation7], 0
    %s10 = scalar_lea.sflag [#allocation7], 1
    %11 = vsyncpa %s10, 0
    %12 = vsyncpa [#allocation5], 0
    loop: start=0, step=1, limit=4
    $region2: #{tpu_custom_call.1} parent=1 // loop_pre_header
      _
    $region3: #{tpu_custom_call.1} parent=1 // loop_header
      %s14 = sphi 0, %s18
      %p15 = scmp.ge.s32.totalorder %s14, 4
      %s21 = sphi 0, %s33
      %s22 = sphi 0, %s29
      %s23 = sphi 0, %s21
      %s24 = sphi 0, %s22
      %s25 = sphi 0, %s23
      %s26 = sphi 0, %s24
      %s36 = sphi 0, %s38
      %s39 = sphi 0, %s36
      %s40 = sphi 0, %s39
      %s56 = sphi 0, %s40
      %s62 = sphi 0, %s64
      %s65 = sphi 0, %s62
      %s66 = sphi 0, %s65
      %s82 = sphi 0, %s66
      %s88 = sphi 0, %s90
      %s91 = sphi 0, %s88
      %s92 = sphi 0, %s91
      %s108 = sphi 0, %s92
      %s114 = sphi 0, %s116
      %s117 = sphi 0, %s114
      %s118 = sphi 0, %s117
      %s134 = sphi 0, %s118
    $region4: #{tpu_custom_call.1} parent=1 // loop_header_branch
      %17 = sbr.rel (%p15) target = $region8
    $region5: #{tpu_custom_call.1} parent=1 // loop_body
      %s19 = ssub.s32 %s14, 1
      %s20 = ssub.s32 %s14, 2
      %s27 = sadd.s32 1, %s22
      %p28 = scmp.ge.s32.totalorder %s27, 2
      %s29 = scalar_select %p28, 0, %s27
      %s30 = sadd.s32 1, %s21
      %s31 = scalar_select %p28, %s30, %s21
      %p32 = scmp.ge.s32.totalorder %s31, 1
      %s33 = scalar_select %p32, 0, %s31
      %s34 = ssub.s32 %s21, %s33
      %p35 = scmp.eq.s32.totalorder %s34, 0
      %s37 = sadd.s32 %s36, 1
      %s38 = scalar_select %p35, %s36, %s37
      %p41 = pneg %p35
      %p42 = scmp.eq.s32.totalorder %s14, 1
      %p43 = por %p41, %p42
      %p44 = scmp.ne.s32.totalorder %s36, %s39
      %p45 = scmp.eq.s32.totalorder %s14, 0
      %p46 = por %p44, %p45
      %p47 = scmp.ne.s32.totalorder %s36, %s39
      %p48 = scmp.eq.s32.totalorder %s19, 1
      %p49 = por %p47, %p48
      %p50 = scmp.ne.s32.totalorder %s39, %s40
      %p51 = scmp.eq.s32.totalorder %s19, 0
      %p52 = por %p50, %p51
      %p53 = scmp.ne.s32.totalorder %s39, %s40
      %p54 = scmp.eq.s32.totalorder %s20, 1
      %p55 = por %p53, %p54
      %p57 = scmp.ne.s32.totalorder %s40, %s56
      %p58 = scmp.eq.s32.totalorder %s20, 0
      %p59 = por %p57, %p58
      %s60 = ssub.s32 %s22, %s29
      %p61 = scmp.eq.s32.totalorder %s60, 0
      %s63 = sadd.s32 %s62, 1
      %s64 = scalar_select %p61, %s62, %s63
      %p67 = pneg %p61
      %p68 = scmp.eq.s32.totalorder %s14, 1
      %p69 = por %p67, %p68
      %p70 = scmp.ne.s32.totalorder %s62, %s65
      %p71 = scmp.eq.s32.totalorder %s14, 0
      %p72 = por %p70, %p71
      %p73 = scmp.ne.s32.totalorder %s62, %s65
      %p74 = scmp.eq.s32.totalorder %s19, 1
      %p75 = por %p73, %p74
      %p76 = scmp.ne.s32.totalorder %s65, %s66
      %p77 = scmp.eq.s32.totalorder %s19, 0
      %p78 = por %p76, %p77
      %p79 = scmp.ne.s32.totalorder %s65, %s66
      %p80 = scmp.eq.s32.totalorder %s20, 1
      %p81 = por %p79, %p80
      %p83 = scmp.ne.s32.totalorder %s66, %s82
      %p84 = scmp.eq.s32.totalorder %s20, 0
      %p85 = por %p83, %p84
      %s86 = ssub.s32 %s22, %s29
      %p87 = scmp.eq.s32.totalorder %s86, 0
      %s89 = sadd.s32 %s88, 1
      %s90 = scalar_select %p87, %s88, %s89
      %p93 = pneg %p87
      %p94 = scmp.eq.s32.totalorder %s14, 1
      %p95 = por %p93, %p94
      %p96 = scmp.ne.s32.totalorder %s88, %s91
      %p97 = scmp.eq.s32.totalorder %s14, 0
      %p98 = por %p96, %p97
      %p99 = scmp.ne.s32.totalorder %s88, %s91
      %p100 = scmp.eq.s32.totalorder %s19, 1
      %p101 = por %p99, %p100
      %p102 = scmp.ne.s32.totalorder %s91, %s92
      %p103 = scmp.eq.s32.totalorder %s19, 0
      %p104 = por %p102, %p103
      %p105 = scmp.ne.s32.totalorder %s91, %s92
      %p106 = scmp.eq.s32.totalorder %s20, 1
      %p107 = por %p105, %p106
      %p109 = scmp.ne.s32.totalorder %s92, %s108
      %p110 = scmp.eq.s32.totalorder %s20, 0
      %p111 = por %p109, %p110
      %s112 = ssub.s32 %s21, %s33
      %p113 = scmp.eq.s32.totalorder %s112, 0
      %s115 = sadd.s32 %s114, 1
      %s116 = scalar_select %p113, %s114, %s115
      %p119 = pneg %p113
      %p120 = scmp.eq.s32.totalorder %s14, 1
      %p121 = por %p119, %p120
      %p122 = scmp.ne.s32.totalorder %s114, %s117
      %p123 = scmp.eq.s32.totalorder %s14, 0
      %p124 = por %p122, %p123
      %p125 = scmp.ne.s32.totalorder %s114, %s117
      %p126 = scmp.eq.s32.totalorder %s19, 1
      %p127 = por %p125, %p126
      %p128 = scmp.ne.s32.totalorder %s117, %s118
      %p129 = scmp.eq.s32.totalorder %s19, 0
      %p130 = por %p128, %p129
      %p131 = scmp.ne.s32.totalorder %s117, %s118
      %p132 = scmp.eq.s32.totalorder %s20, 1
      %p133 = por %p131, %p132
      %p135 = scmp.ne.s32.totalorder %s118, %s134
      %p136 = scmp.eq.s32.totalorder %s20, 0
      %p137 = por %p135, %p136
      %p138 = scmp.le.s32.totalorder 1, %s14
      %p139 = scmp.lt.s32.totalorder %s14, 3
      %p140 = pnand %p138, %p139
      %p141 = pneg %p140
      // Predicated region
      $region9: #{tpu_custom_call.1} parent=5 // pred_check
        _
      $region10: #{tpu_custom_call.1} parent=5 // pred_check_branch
        %143 = sbr.rel (%p140) target = $region12
      $region11: #{tpu_custom_call.1} parent=5 // pred_region
        %s144 = ssub.s32 %s14, 1
        // Predicated region
        $region13: #{tpu_custom_call.1} parent=11 // pred_check
          %p145 = pneg %p52
        $region14: #{tpu_custom_call.1} parent=11 // pred_check_branch
          %147 = sbr.rel (%p145) target = $region16
        $region15: #{tpu_custom_call.1} parent=11 // pred_region
          %s148 = smul.u32 2, %s23
          %s150 = ssub.s32 256, 256
          %151 = vsyncadd [#allocation4], %s150
          %s152 = smul.addr %s148, 2
          %s153 = smul.addr %s152, 64
          %s154 = scalar_lea.hbm %s0, %s153
          %s155 = sshll.u32 [#allocation3], 4
          %s156 = int_to_ptr.vmem [resolvable:$true] %s155
          %161 = dma.hbm_to_vmem [thread:$0]  %s154, 256, %s156, [#allocation4], 64, 64, 4
        $region16: #{tpu_custom_call.1} parent=11 // pred_fallthru
          _
      $region12: #{tpu_custom_call.1} parent=5 // pred_fallthru
        _
      %p162 = scmp.lt.s32.totalorder %s14, 2
      // Predicated region
      $region17: #{tpu_custom_call.1} parent=5 // pred_check
        %p163 = pneg %p162
      $region18: #{tpu_custom_call.1} parent=5 // pred_check_branch
        %165 = sbr.rel (%p163) target = $region20
      $region19: #{tpu_custom_call.1} parent=5 // pred_region
        // Predicated region
        $region21: #{tpu_custom_call.1} parent=19 // pred_check
          %p166 = pneg %p72
        $region22: #{tpu_custom_call.1} parent=19 // pred_check_branch
          %168 = sbr.rel (%p166) target = $region24
        $region23: #{tpu_custom_call.1} parent=19 // pred_region
          %s169 = sand.u32 %s62, 1
          %s170 = scalar_lea.sflag [#allocation7], %s169
          %s171 = sand.u32 %s62, 1
          %s172 = smul.addr %s171, 96
          %s173 = scalar_lea.vmem [#allocation6], %s172
          %s175 = ssub.s32 1536, 1536
          %176 = vsyncadd %s170, %s175
          %s177 = smul.addr %s22, 24
          %s178 = smul.addr %s177, 64
          %s179 = scalar_lea.hbm %s1, %s178
          %s180 = sshll.u32 %s173, 4
          %s181 = int_to_ptr.vmem [resolvable:$true] %s180
          %186 = dma.hbm_to_vmem [thread:$0]  %s179, 1536, %s181, %s170, 64, 64, 4
        $region24: #{tpu_custom_call.1} parent=19 // pred_fallthru
          _
        // Predicated region
        $region25: #{tpu_custom_call.1} parent=19 // pred_check
          %p187 = pneg %p98
        $region26: #{tpu_custom_call.1} parent=19 // pred_check_branch
          %189 = sbr.rel (%p187) target = $region28
        $region27: #{tpu_custom_call.1} parent=19 // pred_region
          %p190 = scmp.lt.s32.totalorder %s22, 1
          %s191 = scalar_select %p190, %s22, 1
          %s192 = smul.addr %s191, 2
          %s193 = scalar_lea.vmem %s2, %s192
        $region28: #{tpu_custom_call.1} parent=19 // pred_fallthru
          _
      $region20: #{tpu_custom_call.1} parent=5 // pred_fallthru
        _
      %p194 = scmp.le.s32.totalorder 1, %s14
      %p195 = scmp.lt.s32.totalorder %s14, 3
      %p196 = pnand %p194, %p195
      %p197 = pneg %p196
      // Predicated region
      $region29: #{tpu_custom_call.1} parent=5 // pred_check
        _
      $region30: #{tpu_custom_call.1} parent=5 // pred_check_branch
        %199 = sbr.rel (%p196) target = $region32
      $region31: #{tpu_custom_call.1} parent=5 // pred_region
        %s200 = ssub.s32 %s14, 1
        // Predicated region
        $region33: #{tpu_custom_call.1} parent=31 // pred_check
          %p201 = pneg %p52
        $region34: #{tpu_custom_call.1} parent=31 // pred_check_branch
          %203 = sbr.rel (%p201) target = $region36
        $region35: #{tpu_custom_call.1} parent=31 // pred_region
          %204 = dma.done [#allocation4], 256
        $region36: #{tpu_custom_call.1} parent=31 // pred_fallthru
          _
        %s205 = sand.u32 %s65, 1
        %s206 = scalar_lea.sflag [#allocation7], %s205
        %s207 = sand.u32 %s65, 1
        %s208 = smul.addr %s207, 96
        %s209 = scalar_lea.vmem [#allocation6], %s208
        // Predicated region
        $region37: #{tpu_custom_call.1} parent=31 // pred_check
          %p210 = pneg %p78
        $region38: #{tpu_custom_call.1} parent=31 // pred_check_branch
          %212 = sbr.rel (%p210) target = $region40
        $region39: #{tpu_custom_call.1} parent=31 // pred_region
          %213 = dma.done %s206, 1536
        $region40: #{tpu_custom_call.1} parent=31 // pred_fallthru
          _
        %p214 = pneg %p52
        %p215 = pneg %p49
        %s216 = sand.u32 %s65, 1
        %s217 = scalar_lea.sflag [#allocation7], %s216
        %s218 = sand.u32 %s65, 1
        %s219 = smul.addr %s218, 96
        %s220 = scalar_lea.vmem [#allocation6], %s219
        %p221 = pneg %p78
        %p222 = pneg %p75
        %p223 = scmp.lt.s32.totalorder %s24, 1
        %s224 = scalar_select %p223, %s24, 1
        %s225 = smul.addr %s224, 2
        %s226 = scalar_lea.vmem %s2, %s225
        %p227 = pneg %p104
        %p228 = pneg %p101
        %p229 = pneg %p130
        %p230 = pneg %p127
        %s231 = smul.u32 2, %s23
        %p232 = scmp.lt.s32.totalorder %s24, 1
        %s233 = scalar_select %p232, %s24, 1
        %s234 = smul.addr %s233, 2
        %s235 = scalar_lea.vmem %s2, %s234
        %s236 = smul.u32 2, %s23
        %p238 = scmp.eq.s32.totalorder %s24, 0
        // Predicated region
        $region41: #{tpu_custom_call.1} parent=31 // pred_check
          %p239 = pneg %p238
        $region42: #{tpu_custom_call.1} parent=31 // pred_check_branch
          %241 = sbr.rel (%p239) target = $region44
        $region43: #{tpu_custom_call.1} parent=31 // pred_region
          %vm242 = vcmask 253952
          %243 = vst.msk [vmem:[#allocation2] sm:$0x1] %vm242, 0.0
          %244 = vst.msk [vmem:[#allocation2 + $0x18] sm:$0x1] %vm242, 0.0
          %245 = vst.msk [vmem:[#allocation2 + $0x11] sm:$0x1] %vm242, 0.0
          %246 = vst.msk [vmem:[#allocation2 + $0x29] sm:$0x1] %vm242, 0.0
          %v247 = vld [vmem:[#allocation3] sm:$0xf]
          %v248 = vld [vmem:[#allocation3 + $0x4] sm:$0xf]
          %v249 = vld [vmem:[#allocation3 + $0x8] sm:$0xf]
          %v250 = vld [vmem:[#allocation3 + $0xc] sm:$0xf]
          %v251 = vunpack.c.l.bf16 %v247
          %v252 = vunpack.c.l.bf16 %v248
          %v253 = vunpack.c.l.bf16 %v249
          %v254 = vunpack.c.l.bf16 %v250
          %vm255 = vcmask 261120
          %256 = vst.msk [vmem:[#allocation2 + $0x1] sm:$0xff] %vm255, %v251
          %257 = vst.msk [vmem:[#allocation2 + $0x9] sm:$0xff] %vm255, %v252
          %258 = vst.msk [vmem:[#allocation2 + $0x19] sm:$0xff] %vm255, %v253
          %259 = vst.msk [vmem:[#allocation2 + $0x21] sm:$0xff] %vm255, %v254
        $region44: #{tpu_custom_call.1} parent=31 // pred_fallthru
          _
        %v260 = vld [vmem:[%s235] sm:$0x1]
        %v262 = vlaneseq
        %v263 = vshrl.u32 %v262, 7
        %v264 = vsub.s32 0, %v263
        %v265 = vrot.slane %v260, %v264
        %s267 = scalar_lea.vmem %s235, 1
        %v268 = vld [vmem:[%s267] sm:$0x1]
        %v270 = vlaneseq
        %v271 = vshrl.u32 %v270, 7
        %v272 = vsub.s32 0, %v271
        %v273 = vrot.slane %v268, %v272
        %v275 = vld [vmem:[#allocation2] sm:$0xff]
        %v276 = vld [vmem:[#allocation2 + $0x8] sm:$0xff]
        %v277 = vld [vmem:[#allocation2 + $0x18] sm:$0xff]
        %v278 = vld [vmem:[#allocation2 + $0x20] sm:$0xff]
        %v279 = vpack.c.bf16 %v276, %v275
        %v280 = vpack.c.bf16 %v278, %v277
        %v281 = vld [vmem:[%s209] sm:$0xf]
        %v282 = vld [vmem:[%s209 + $0x4] sm:$0xf]
        %v283 = vld [vmem:[%s209 + $0x8] sm:$0xf]
        %v284 = vld [vmem:[%s209 + $0xc] sm:$0xf]
        %v289 = vunpack.c.l.b16 %v281
        %v290 = vunpack.c.l.b16 %v282
        %v291 = vunpack.c.l.b16 %v283
        %v292 = vunpack.c.l.b16 %v284
        %v293 = vpack.c.b16 %v290, %v289
        %v294 = vpack.c.b16 %v292, %v291
        %vm297 = vcmask 261120
        %v299 = vsel %vm297, %v279, 0
        %v302 = vsel %vm297, %v280, 0
        %304 = vmatprep.subr.bf16.mxu0 0
        %305 = vmatpush1.bf16.msra.mxu0 %v293
        %306 = vmatprep.subr.bf16.mxu0 0
        %307 = vmatpush1.bf16.msra.mxu0 %v294
        %308 = vmatprep.subr.bf16.mxu0 0
        %309 = vmatpush1.bf16.msra.mxu0 0
        %310 = vmatprep.subr.bf16.mxu0 0
        %311 = vmatpush1.bf16.msra.mxu0 0
        %312 = vmatprep.subr.bf16.mxu0 0
        %313 = vmatpush1.bf16.msra.mxu0 0
        %314 = vmatprep.subr.bf16.mxu0 0
        %315 = vmatpush1.bf16.msra.mxu0 0
        %316 = vmatprep.subr.bf16.mxu0 0
        %317 = vmatpush1.bf16.msra.mxu0 0
        %318 = vmatprep.subr.bf16.mxu0 0
        %319 = vmatpush1.bf16.msra.mxu0 0
        %320 = vmatprep.subr.bf16.mxu0 0
        %321 = vmatpush1.bf16.msra.mxu0 0
        %322 = vmatprep.subr.bf16.mxu0 0
        %323 = vmatpush1.bf16.msra.mxu0 0
        %324 = vmatprep.subr.bf16.mxu0 0
        %325 = vmatpush1.bf16.msra.mxu0 0
        %326 = vmatprep.subr.bf16.mxu0 0
        %327 = vmatpush1.bf16.msra.mxu0 0
        %328 = vmatprep.subr.bf16.mxu0 0
        %329 = vmatpush1.bf16.msra.mxu0 0
        %330 = vmatprep.subr.bf16.mxu0 0
        %331 = vmatpush1.bf16.msra.mxu0 0
        %332 = vmatprep.subr.bf16.mxu0 0
        %333 = vmatpush1.bf16.msra.mxu0 0
        %334 = vmatprep.subr.bf16.mxu0 0
        %335 = vmatpush1.bf16.msra.mxu0 0
        %336 = vmatprep.mubr.bf16.mxu0 0
        %337 = vmatmul.mubr.bf16.gmra.mrb[0].mxu0 %v299
        %v338 = vpop.f32.mrb[0].mxu0
        %v339 = vadd.f32 0.0, %v338
        %v340 = vpop.f32.mrb[0].mxu0
        %v341 = vpop.f32.mrb[0].mxu0
        %v342 = vadd.f32 0.0, %v341
        %v343 = vpop.f32.mrb[0].mxu0
        %344 = vmatprep.mubr.bf16.mxu0 0
        %345 = vmatmul.mubr.bf16.gmra.mrb[0].mxu0 %v302
        %v346 = vpop.f32.mrb[0].mxu0
        %v347 = vadd.f32 0.0, %v346
        %v348 = vpop.f32.mrb[0].mxu0
        %v349 = vpop.f32.mrb[0].mxu0
        %v350 = vadd.f32 0.0, %v349
        %v351 = vpop.f32.mrb[0].mxu0
        %352 = vdwg.mxu0
        %v353 = vadd.f32 %v265, %v339
        %v354 = vadd.f32 %v265, %v342
        %v355 = vadd.f32 %v265, %v347
        %v356 = vadd.f32 %v265, %v350
        %s357 = scalar_lea.vmem %s209, 48 [#allocation6]
        %v358 = vld [vmem:[%s357] sm:$0xf]
        %v359 = vld [vmem:[%s357 + $0x4] sm:$0xf]
        %v360 = vld [vmem:[%s357 + $0x8] sm:$0xf]
        %v361 = vld [vmem:[%s357 + $0xc] sm:$0xf]
        %v366 = vunpack.c.l.b16 %v358
        %v367 = vunpack.c.l.b16 %v359
        %v368 = vunpack.c.l.b16 %v360
        %v369 = vunpack.c.l.b16 %v361
        %v370 = vpack.c.b16 %v367, %v366
        %v371 = vpack.c.b16 %v369, %v368
        %374 = vmatprep.subr.bf16.mxu0 0
        %375 = vmatpush1.bf16.msra.mxu0 %v370
        %376 = vmatprep.subr.bf16.mxu0 0
        %377 = vmatpush1.bf16.msra.mxu0 %v371
        %378 = vmatprep.subr.bf16.mxu0 0
        %379 = vmatpush1.bf16.msra.mxu0 0
        %380 = vmatprep.subr.bf16.mxu0 0
        %381 = vmatpush1.bf16.msra.mxu0 0
        %382 = vmatprep.subr.bf16.mxu0 0
        %383 = vmatpush1.bf16.msra.mxu0 0
        %384 = vmatprep.subr.bf16.mxu0 0
        %385 = vmatpush1.bf16.msra.mxu0 0
        %386 = vmatprep.subr.bf16.mxu0 0
        %387 = vmatpush1.bf16.msra.mxu0 0
        %388 = vmatprep.subr.bf16.mxu0 0
        %389 = vmatpush1.bf16.msra.mxu0 0
        %390 = vmatprep.subr.bf16.mxu0 0
        %391 = vmatpush1.bf16.msra.mxu0 0
        %392 = vmatprep.subr.bf16.mxu0 0
        %393 = vmatpush1.bf16.msra.mxu0 0
        %394 = vmatprep.subr.bf16.mxu0 0
        %395 = vmatpush1.bf16.msra.mxu0 0
        %396 = vmatprep.subr.bf16.mxu0 0
        %397 = vmatpush1.bf16.msra.mxu0 0
        %398 = vmatprep.subr.bf16.mxu0 0
        %399 = vmatpush1.bf16.msra.mxu0 0
        %400 = vmatprep.subr.bf16.mxu0 0
        %401 = vmatpush1.bf16.msra.mxu0 0
        %402 = vmatprep.subr.bf16.mxu0 0
        %403 = vmatpush1.bf16.msra.mxu0 0
        %404 = vmatprep.subr.bf16.mxu0 0
        %405 = vmatpush1.bf16.msra.mxu0 0
        %406 = vmatprep.mubr.bf16.mxu0 0
        %407 = vmatmul.mubr.bf16.gmra.mrb[0].mxu0 %v299
        %v408 = vpop.f32.mrb[0].mxu0
        %v409 = vadd.f32 0.0, %v408
        %v410 = vpop.f32.mrb[0].mxu0
        %v411 = vpop.f32.mrb[0].mxu0
        %v412 = vadd.f32 0.0, %v411
        %v413 = vpop.f32.mrb[0].mxu0
        %414 = vmatprep.mubr.bf16.mxu0 0
        %415 = vmatmul.mubr.bf16.gmra.mrb[0].mxu0 %v302
        %v416 = vpop.f32.mrb[0].mxu0
        %v417 = vadd.f32 0.0, %v416
        %v418 = vpop.f32.mrb[0].mxu0
        %v419 = vpop.f32.mrb[0].mxu0
        %v420 = vadd.f32 0.0, %v419
        %v421 = vpop.f32.mrb[0].mxu0
        %422 = vdwg.mxu0
        %v423 = vadd.f32 %v273, %v409
        %v424 = vadd.f32 %v273, %v412
        %v425 = vadd.f32 %v273, %v417
        %v426 = vadd.f32 %v273, %v420
        %v427 = vld [vmem:[#allocation2 + $0x1] sm:$0xff]
        %v428 = vld [vmem:[#allocation2 + $0x9] sm:$0xff]
        %v429 = vld [vmem:[#allocation2 + $0x19] sm:$0xff]
        %v430 = vld [vmem:[#allocation2 + $0x21] sm:$0xff]
        %v431 = vpack.c.bf16 %v428, %v427
        %v432 = vpack.c.bf16 %v430, %v429
        %s433 = scalar_lea.vmem %s209, 16 [#allocation6]
        %v434 = vld [vmem:[%s433] sm:$0xf]
        %v435 = vld [vmem:[%s433 + $0x4] sm:$0xf]
        %v436 = vld [vmem:[%s433 + $0x8] sm:$0xf]
        %v437 = vld [vmem:[%s433 + $0xc] sm:$0xf]
        %v442 = vunpack.c.l.b16 %v434
        %v443 = vunpack.c.l.b16 %v435
        %v444 = vunpack.c.l.b16 %v436
        %v445 = vunpack.c.l.b16 %v437
        %v446 = vpack.c.b16 %v443, %v442
        %v447 = vpack.c.b16 %v445, %v444
        %v451 = vsel %vm297, %v431, 0
        %v454 = vsel %vm297, %v432, 0
        %456 = vmatprep.subr.bf16.mxu0 0
        %457 = vmatpush1.bf16.msra.mxu0 %v446
        %458 = vmatprep.subr.bf16.mxu0 0
        %459 = vmatpush1.bf16.msra.mxu0 %v447
        %460 = vmatprep.subr.bf16.mxu0 0
        %461 = vmatpush1.bf16.msra.mxu0 0
        %462 = vmatprep.subr.bf16.mxu0 0
        %463 = vmatpush1.bf16.msra.mxu0 0
        %464 = vmatprep.subr.bf16.mxu0 0
        %465 = vmatpush1.bf16.msra.mxu0 0
        %466 = vmatprep.subr.bf16.mxu0 0
        %467 = vmatpush1.bf16.msra.mxu0 0
        %468 = vmatprep.subr.bf16.mxu0 0
        %469 = vmatpush1.bf16.msra.mxu0 0
        %470 = vmatprep.subr.bf16.mxu0 0
        %471 = vmatpush1.bf16.msra.mxu0 0
        %472 = vmatprep.subr.bf16.mxu0 0
        %473 = vmatpush1.bf16.msra.mxu0 0
        %474 = vmatprep.subr.bf16.mxu0 0
        %475 = vmatpush1.bf16.msra.mxu0 0
        %476 = vmatprep.subr.bf16.mxu0 0
        %477 = vmatpush1.bf16.msra.mxu0 0
        %478 = vmatprep.subr.bf16.mxu0 0
        %479 = vmatpush1.bf16.msra.mxu0 0
        %480 = vmatprep.subr.bf16.mxu0 0
        %481 = vmatpush1.bf16.msra.mxu0 0
        %482 = vmatprep.subr.bf16.mxu0 0
        %483 = vmatpush1.bf16.msra.mxu0 0
        %484 = vmatprep.subr.bf16.mxu0 0
        %485 = vmatpush1.bf16.msra.mxu0 0
        %486 = vmatprep.subr.bf16.mxu0 0
        %487 = vmatpush1.bf16.msra.mxu0 0
        %488 = vmatprep.mubr.bf16.mxu0 0
        %489 = vmatmul.mubr.bf16.gmra.mrb[0].mxu0 %v451
        %v490 = vpop.f32.mrb[0].mxu0
        %v491 = vadd.f32 0.0, %v490
        %v492 = vpop.f32.mrb[0].mxu0
        %v493 = vpop.f32.mrb[0].mxu0
        %v494 = vadd.f32 0.0, %v493
        %v495 = vpop.f32.mrb[0].mxu0
        %496 = vmatprep.mubr.bf16.mxu0 0
        %497 = vmatmul.mubr.bf16.gmra.mrb[0].mxu0 %v454
        %v498 = vpop.f32.mrb[0].mxu0
        %v499 = vadd.f32 0.0, %v498
        %v500 = vpop.f32.mrb[0].mxu0
        %v501 = vpop.f32.mrb[0].mxu0
        %v502 = vadd.f32 0.0, %v501
        %v503 = vpop.f32.mrb[0].mxu0
        %504 = vdwg.mxu0
        %v505 = vadd.f32 %v353, %v491
        %v506 = vadd.f32 %v354, %v494
        %v507 = vadd.f32 %v355, %v499
        %v508 = vadd.f32 %v356, %v502
        %s509 = scalar_lea.vmem %s209, 64 [#allocation6]
        %v510 = vld [vmem:[%s509] sm:$0xf]
        %v511 = vld [vmem:[%s509 + $0x4] sm:$0xf]
        %v512 = vld [vmem:[%s509 + $0x8] sm:$0xf]
        %v513 = vld [vmem:[%s509 + $0xc] sm:$0xf]
        %v518 = vunpack.c.l.b16 %v510
        %v519 = vunpack.c.l.b16 %v511
        %v520 = vunpack.c.l.b16 %v512
        %v521 = vunpack.c.l.b16 %v513
        %v522 = vpack.c.b16 %v519, %v518
        %v523 = vpack.c.b16 %v521, %v520
        %526 = vmatprep.subr.bf16.mxu0 0
        %527 = vmatpush1.bf16.msra.mxu0 %v522
        %528 = vmatprep.subr.bf16.mxu0 0
        %529 = vmatpush1.bf16.msra.mxu0 %v523
        %530 = vmatprep.subr.bf16.mxu0 0
        %531 = vmatpush1.bf16.msra.mxu0 0
        %532 = vmatprep.subr.bf16.mxu0 0
        %533 = vmatpush1.bf16.msra.mxu0 0
        %534 = vmatprep.subr.bf16.mxu0 0
        %535 = vmatpush1.bf16.msra.mxu0 0
        %536 = vmatprep.subr.bf16.mxu0 0
        %537 = vmatpush1.bf16.msra.mxu0 0
        %538 = vmatprep.subr.bf16.mxu0 0
        %539 = vmatpush1.bf16.msra.mxu0 0
        %540 = vmatprep.subr.bf16.mxu0 0
        %541 = vmatpush1.bf16.msra.mxu0 0
        %542 = vmatprep.subr.bf16.mxu0 0
        %543 = vmatpush1.bf16.msra.mxu0 0
        %544 = vmatprep.subr.bf16.mxu0 0
        %545 = vmatpush1.bf16.msra.mxu0 0
        %546 = vmatprep.subr.bf16.mxu0 0
        %547 = vmatpush1.bf16.msra.mxu0 0
        %548 = vmatprep.subr.bf16.mxu0 0
        %549 = vmatpush1.bf16.msra.mxu0 0
        %550 = vmatprep.subr.bf16.mxu0 0
        %551 = vmatpush1.bf16.msra.mxu0 0
        %552 = vmatprep.subr.bf16.mxu0 0
        %553 = vmatpush1.bf16.msra.mxu0 0
        %554 = vmatprep.subr.bf16.mxu0 0
        %555 = vmatpush1.bf16.msra.mxu0 0
        %556 = vmatprep.subr.bf16.mxu0 0
        %557 = vmatpush1.bf16.msra.mxu0 0
        %558 = vmatprep.mubr.bf16.mxu0 0
        %559 = vmatmul.mubr.bf16.gmra.mrb[0].mxu0 %v451
        %v560 = vpop.f32.mrb[0].mxu0
        %v561 = vadd.f32 0.0, %v560
        %v562 = vpop.f32.mrb[0].mxu0
        %v563 = vpop.f32.mrb[0].mxu0
        %v564 = vadd.f32 0.0, %v563
        %v565 = vpop.f32.mrb[0].mxu0
        %566 = vmatprep.mubr.bf16.mxu0 0
        %567 = vmatmul.mubr.bf16.gmra.mrb[0].mxu0 %v454
        %v568 = vpop.f32.mrb[0].mxu0
        %v569 = vadd.f32 0.0, %v568
        %v570 = vpop.f32.mrb[0].mxu0
        %v571 = vpop.f32.mrb[0].mxu0
        %v572 = vadd.f32 0.0, %v571
        %v573 = vpop.f32.mrb[0].mxu0
        %574 = vdwg.mxu0
        %v575 = vadd.f32 %v423, %v561
        %v576 = vadd.f32 %v424, %v564
        %v577 = vadd.f32 %v425, %v569
        %v578 = vadd.f32 %v426, %v572
        %v579 = vld [vmem:[#allocation2 + $0x2] sm:$0xff]
        %v580 = vld [vmem:[#allocation2 + $0xa] sm:$0xff]
        %v581 = vld [vmem:[#allocation2 + $0x1a] sm:$0xff]
        %v582 = vld [vmem:[#allocation2 + $0x22] sm:$0xff]
        %v583 = vpack.c.bf16 %v580, %v579
        %v584 = vpack.c.bf16 %v582, %v581
        %s585 = scalar_lea.vmem %s209, 32 [#allocation6]
        %v586 = vld [vmem:[%s585] sm:$0xf]
        %v587 = vld [vmem:[%s585 + $0x4] sm:$0xf]
        %v588 = vld [vmem:[%s585 + $0x8] sm:$0xf]
        %v589 = vld [vmem:[%s585 + $0xc] sm:$0xf]
        %v594 = vunpack.c.l.b16 %v586
        %v595 = vunpack.c.l.b16 %v587
        %v596 = vunpack.c.l.b16 %v588
        %v597 = vunpack.c.l.b16 %v589
        %v598 = vpack.c.b16 %v595, %v594
        %v599 = vpack.c.b16 %v597, %v596
        %v603 = vsel %vm297, %v583, 0
        %v606 = vsel %vm297, %v584, 0
        %608 = vmatprep.subr.bf16.mxu0 0
        %609 = vmatpush1.bf16.msra.mxu0 %v598
        %610 = vmatprep.subr.bf16.mxu0 0
        %611 = vmatpush1.bf16.msra.mxu0 %v599
        %612 = vmatprep.subr.bf16.mxu0 0
        %613 = vmatpush1.bf16.msra.mxu0 0
        %614 = vmatprep.subr.bf16.mxu0 0
        %615 = vmatpush1.bf16.msra.mxu0 0
        %616 = vmatprep.subr.bf16.mxu0 0
        %617 = vmatpush1.bf16.msra.mxu0 0
        %618 = vmatprep.subr.bf16.mxu0 0
        %619 = vmatpush1.bf16.msra.mxu0 0
        %620 = vmatprep.subr.bf16.mxu0 0
        %621 = vmatpush1.bf16.msra.mxu0 0
        %622 = vmatprep.subr.bf16.mxu0 0
        %623 = vmatpush1.bf16.msra.mxu0 0
        %624 = vmatprep.subr.bf16.mxu0 0
        %625 = vmatpush1.bf16.msra.mxu0 0
        %626 = vmatprep.subr.bf16.mxu0 0
        %627 = vmatpush1.bf16.msra.mxu0 0
        %628 = vmatprep.subr.bf16.mxu0 0
        %629 = vmatpush1.bf16.msra.mxu0 0
        %630 = vmatprep.subr.bf16.mxu0 0
        %631 = vmatpush1.bf16.msra.mxu0 0
        %632 = vmatprep.subr.bf16.mxu0 0
        %633 = vmatpush1.bf16.msra.mxu0 0
        %634 = vmatprep.subr.bf16.mxu0 0
        %635 = vmatpush1.bf16.msra.mxu0 0
        %636 = vmatprep.subr.bf16.mxu0 0
        %637 = vmatpush1.bf16.msra.mxu0 0
        %638 = vmatprep.subr.bf16.mxu0 0
        %639 = vmatpush1.bf16.msra.mxu0 0
        %640 = vmatprep.mubr.bf16.mxu0 0
        %641 = vmatmul.mubr.bf16.gmra.mrb[0].mxu0 %v603
        %v642 = vpop.f32.mrb[0].mxu0
        %v643 = vadd.f32 0.0, %v642
        %v644 = vpop.f32.mrb[0].mxu0
        %v645 = vpop.f32.mrb[0].mxu0
        %v646 = vadd.f32 0.0, %v645
        %v647 = vpop.f32.mrb[0].mxu0
        %648 = vmatprep.mubr.bf16.mxu0 0
        %649 = vmatmul.mubr.bf16.gmra.mrb[0].mxu0 %v606
        %v650 = vpop.f32.mrb[0].mxu0
        %v651 = vadd.f32 0.0, %v650
        %v652 = vpop.f32.mrb[0].mxu0
        %v653 = vpop.f32.mrb[0].mxu0
        %v654 = vadd.f32 0.0, %v653
        %v655 = vpop.f32.mrb[0].mxu0
        %656 = vdwg.mxu0
        %v657 = vadd.f32 %v505, %v643
        %v658 = vadd.f32 %v506, %v646
        %v659 = vadd.f32 %v507, %v651
        %v660 = vadd.f32 %v508, %v654
        %s661 = scalar_lea.vmem %s209, 80 [#allocation6]
        %v662 = vld [vmem:[%s661] sm:$0xf]
        %v663 = vld [vmem:[%s661 + $0x4] sm:$0xf]
        %v664 = vld [vmem:[%s661 + $0x8] sm:$0xf]
        %v665 = vld [vmem:[%s661 + $0xc] sm:$0xf]
        %v670 = vunpack.c.l.b16 %v662
        %v671 = vunpack.c.l.b16 %v663
        %v672 = vunpack.c.l.b16 %v664
        %v673 = vunpack.c.l.b16 %v665
        %v674 = vpack.c.b16 %v671, %v670
        %v675 = vpack.c.b16 %v673, %v672
        %678 = vmatprep.subr.bf16.mxu0 0
        %679 = vmatpush1.bf16.msra.mxu0 %v674
        %680 = vmatprep.subr.bf16.mxu0 0
        %681 = vmatpush1.bf16.msra.mxu0 %v675
        %682 = vmatprep.subr.bf16.mxu0 0
        %683 = vmatpush1.bf16.msra.mxu0 0
        %684 = vmatprep.subr.bf16.mxu0 0
        %685 = vmatpush1.bf16.msra.mxu0 0
        %686 = vmatprep.subr.bf16.mxu0 0
        %687 = vmatpush1.bf16.msra.mxu0 0
        %688 = vmatprep.subr.bf16.mxu0 0
        %689 = vmatpush1.bf16.msra.mxu0 0
        %690 = vmatprep.subr.bf16.mxu0 0
        %691 = vmatpush1.bf16.msra.mxu0 0
        %692 = vmatprep.subr.bf16.mxu0 0
        %693 = vmatpush1.bf16.msra.mxu0 0
        %694 = vmatprep.subr.bf16.mxu0 0
        %695 = vmatpush1.bf16.msra.mxu0 0
        %696 = vmatprep.subr.bf16.mxu0 0
        %697 = vmatpush1.bf16.msra.mxu0 0
        %698 = vmatprep.subr.bf16.mxu0 0
        %699 = vmatpush1.bf16.msra.mxu0 0
        %700 = vmatprep.subr.bf16.mxu0 0
        %701 = vmatpush1.bf16.msra.mxu0 0
        %702 = vmatprep.subr.bf16.mxu0 0
        %703 = vmatpush1.bf16.msra.mxu0 0
        %704 = vmatprep.subr.bf16.mxu0 0
        %705 = vmatpush1.bf16.msra.mxu0 0
        %706 = vmatprep.subr.bf16.mxu0 0
        %707 = vmatpush1.bf16.msra.mxu0 0
        %708 = vmatprep.subr.bf16.mxu0 0
        %709 = vmatpush1.bf16.msra.mxu0 0
        %710 = vmatprep.mubr.bf16.mxu0 0
        %711 = vmatmul.mubr.bf16.gmra.mrb[0].mxu0 %v603
        %v712 = vpop.f32.mrb[0].mxu0
        %v713 = vadd.f32 0.0, %v712
        %v714 = vpop.f32.mrb[0].mxu0
        %v715 = vpop.f32.mrb[0].mxu0
        %v716 = vadd.f32 0.0, %v715
        %v717 = vpop.f32.mrb[0].mxu0
        %718 = vmatprep.mubr.bf16.mxu0 0
        %719 = vmatmul.mubr.bf16.gmra.mrb[0].mxu0 %v606
        %v720 = vpop.f32.mrb[0].mxu0
        %v721 = vadd.f32 0.0, %v720
        %v722 = vpop.f32.mrb[0].mxu0
        %v723 = vpop.f32.mrb[0].mxu0
        %v724 = vadd.f32 0.0, %v723
        %v725 = vpop.f32.mrb[0].mxu0
        %726 = vdwg.mxu0
        %v727 = vadd.f32 %v575, %v713
        %v728 = vadd.f32 %v576, %v716
        %v729 = vadd.f32 %v577, %v721
        %v730 = vadd.f32 %v578, %v724
        %v731 = vxor.u32 %v727, 2147483648
        %v732 = vxor.u32 %v728, 2147483648
        %v733 = vxor.u32 %v729, 2147483648
        %v734 = vxor.u32 %v730, 2147483648
        %v735 = vmul.f32 %v731, 1.442695
        %v736 = vpow.pop %v735
        %v737 = vmul.f32 %v732, 1.442695
        %v738 = vpow.pop %v737
        %v739 = vmul.f32 %v733, 1.442695
        %v740 = vpow.pop %v739
        %v741 = vmul.f32 %v734, 1.442695
        %v742 = vpow.pop %v741
        %v743 = vadd.f32 %v736, 1.0
        %v744 = vadd.f32 %v738, 1.0
        %v745 = vadd.f32 %v740, 1.0
        %v746 = vadd.f32 %v742, 1.0
        %v747 = vrcp.pop %v743
        %v748 = vmul.f32 1.0, %v747
        %v749 = vrcp.pop %v744
        %v750 = vmul.f32 1.0, %v749
        %v751 = vrcp.pop %v745
        %v752 = vmul.f32 1.0, %v751
        %v753 = vrcp.pop %v746
        %v754 = vmul.f32 1.0, %v753
        %v755 = vmul.f32 %v657, %v748
        %v756 = vmul.f32 %v658, %v750
        %v757 = vmul.f32 %v659, %v752
        %v758 = vmul.f32 %v660, %v754
        %v759 = vadd.f32 %v755, %v427
        %v760 = vadd.f32 %v756, %v428
        %v761 = vadd.f32 %v757, %v429
        %v762 = vadd.f32 %v758, %v430
        %v763 = vmul.f32 %v759, 0.70710677
        %v764 = vmul.f32 %v760, 0.70710677
        %v765 = vmul.f32 %v761, 0.70710677
        %v766 = vmul.f32 %v762, 0.70710677
        %p767 = scmp.lt.s32.totalorder %s24, 1
        // Predicated region
        $region45: #{tpu_custom_call.1} parent=31 // pred_check
          %p768 = pneg %p767
        $region46: #{tpu_custom_call.1} parent=31 // pred_check_branch
          %770 = sbr.rel (%p768) target = $region48
        $region47: #{tpu_custom_call.1} parent=31 // pred_region
          %771 = vst.msk [vmem:[#allocation2 + $0x1] sm:$0xff] %vm297, %v763
          %772 = vst.msk [vmem:[#allocation2 + $0x9] sm:$0xff] %vm297, %v764
          %773 = vst.msk [vmem:[#allocation2 + $0x19] sm:$0xff] %vm297, %v765
          %774 = vst.msk [vmem:[#allocation2 + $0x21] sm:$0xff] %vm297, %v766
        $region48: #{tpu_custom_call.1} parent=31 // pred_fallthru
          _
        %p775 = scmp.eq.s32.totalorder %s24, 1
        // Predicated region
        $region49: #{tpu_custom_call.1} parent=31 // pred_check
          %p776 = pneg %p775
        $region50: #{tpu_custom_call.1} parent=31 // pred_check_branch
          %778 = sbr.rel (%p776) target = $region52
        $region51: #{tpu_custom_call.1} parent=31 // pred_region
          %v779 = vld [vmem:[#allocation3] sm:$0xf]
          %v780 = vld [vmem:[#allocation3 + $0x4] sm:$0xf]
          %v781 = vld [vmem:[#allocation3 + $0x8] sm:$0xf]
          %v782 = vld [vmem:[#allocation3 + $0xc] sm:$0xf]
          %v783 = vunpack.c.l.bf16 %v779
          %v784 = vunpack.c.l.bf16 %v780
          %v785 = vunpack.c.l.bf16 %v781
          %v786 = vunpack.c.l.bf16 %v782
          %v787 = vadd.f32 %v763, %v783
          %v788 = vadd.f32 %v764, %v784
          %v789 = vadd.f32 %v765, %v785
          %v790 = vadd.f32 %v766, %v786
          %v791 = vmul.f32 %v787, 0.70710677
          %v792 = vmul.f32 %v788, 0.70710677
          %v793 = vmul.f32 %v789, 0.70710677
          %v794 = vmul.f32 %v790, 0.70710677
          %795 = vst.msk [vmem:[#allocation8] sm:$0xff] %vm297, %v791
          %796 = vst.msk [vmem:[#allocation8 + $0x8] sm:$0xff] %vm297, %v792
          %797 = vst.msk [vmem:[#allocation8 + $0x10] sm:$0xff] %vm297, %v793
          %798 = vst.msk [vmem:[#allocation8 + $0x18] sm:$0xff] %vm297, %v794
        $region52: #{tpu_custom_call.1} parent=31 // pred_fallthru
          _
        // Predicated region
        $region53: #{tpu_custom_call.1} parent=31 // pred_check
          %p799 = pneg %p127
        $region54: #{tpu_custom_call.1} parent=31 // pred_check_branch
          %801 = sbr.rel (%p799) target = $region56
        $region55: #{tpu_custom_call.1} parent=31 // pred_region
          %s802 = smul.u32 2, %s23
          %s804 = ssub.s32 512, 512
          %805 = vsyncadd [#allocation5], %s804
          %s806 = smul.addr %s802, 2
          %s807 = smul.addr %s806, 128
          %s808 = scalar_lea.hbm %s3, %s807
          %s809 = sshll.u32 [#allocation8], 4
          %s810 = int_to_ptr.vmem [resolvable:$true] %s809
          %815 = dma.vmem_to_hbm [thread:$0]  %s810, 512, %s808, [#allocation5], 128, 128, 8
        $region56: #{tpu_custom_call.1} parent=31 // pred_fallthru
          _
        // Predicated region
        $region57: #{tpu_custom_call.1} parent=31 // pred_check
          %p816 = pneg %p127
        $region58: #{tpu_custom_call.1} parent=31 // pred_check_branch
          %818 = sbr.rel (%p816) target = $region60
        $region59: #{tpu_custom_call.1} parent=31 // pred_region
          %819 = dma.done [#allocation5], 512
        $region60: #{tpu_custom_call.1} parent=31 // pred_fallthru
          _
      $region32: #{tpu_custom_call.1} parent=5 // pred_fallthru
        _
      %p820 = scmp.le.s32.totalorder 2, %s14
      // Predicated region
      $region61: #{tpu_custom_call.1} parent=5 // pred_check
        %p821 = pneg %p820
      $region62: #{tpu_custom_call.1} parent=5 // pred_check_branch
        %823 = sbr.rel (%p821) target = $region64
      $region63: #{tpu_custom_call.1} parent=5 // pred_region
        %s824 = ssub.s32 %s14, 2
      $region64: #{tpu_custom_call.1} parent=5 // pred_fallthru
        _
    $region6: #{tpu_custom_call.1} parent=1 // loop_footer
      %s18 = sadd.s32 1, %s14
    $region7: #{tpu_custom_call.1} parent=1 // loop_footer_branch
      %13 = sbr.rel target = $region3
    $region8: #{tpu_custom_call.1} parent=1 // loop_exit
      _
    %825 = vsyncpa [#allocation4], 1
    %s826 = scalar_lea.sflag [#allocation4], 1
    %827 = vsyncpa %s826, 1
    %828 = vsyncpa [#allocation7], 1
    %s829 = scalar_lea.sflag [#allocation7], 1
    %830 = vsyncpa %s829, 1
    %831 = vsyncpa [#allocation5], 1
    %s832 = scalar_lea.sflag [#allocation5], 1
    %833 = vsyncpa %s832, 1

</llo_original>
